<compile_context>
chip_gen: v7x
topology: tpu7x:2x2x1
jax: 0.10.0
libtpu: 0.0.40
codegen_flags: <defaults>
</compile_context>

<pallas_src>
import math

import jax
import jax.numpy as jnp
from jax import lax
from jax.experimental import pallas as pl
from jax.experimental.pallas import tpu as pltpu

n_embd = 384
block_size = 128
dropout_p = 0.2  # TODO(synk): dropout is identity here (eval-mode); PyTorch RNG not reproducible.

LANE = 128                      # TPU lane width; head dim zero-padded to a multiple of this.
_VMEM_BUDGET_BYTES = 32 << 20   # conservative budget used for batch-block sizing (fits all gens)
_VMEM_LIMIT_BYTES = 48 << 20    # explicit scoped-VMEM limit (< 64 MiB physical on v7x)


def _head_kernel(x_ref, wqkv_ref, o_ref):
    # x_ref:    (Bb, T, C)    bf16
    # wqkv_ref: (C, 3*Hp)     bf16   (k | q_scaled | v, each zero-padded to Hp lanes)
    # o_ref:    (Bb, T, Hp)   bf16
    bb, t, c = x_ref.shape
    hp = o_ref.shape[-1]

    # Fused QKV projection: one lane-dense (Bb*T, C) @ (C, 3*Hp) MXU pass, f32 acc.
    x2 = x_ref[...].reshape(bb * t, c)
    qkv = jnp.dot(x2, wqkv_ref[...], preferred_element_type=jnp.float32)

    # Slice first, then cast per-slice to bf16 (shortens the f32 buffer's live range).
    k = qkv[:, 0 * hp:1 * hp].astype(jnp.bfloat16).reshape(bb, t, hp)
    q = qkv[:, 1 * hp:2 * hp].astype(jnp.bfloat16).reshape(bb, t, hp)
    v = qkv[:, 2 * hp:3 * hp].astype(jnp.bfloat16).reshape(bb, t, hp)

    # Attention scores: batched q @ k^T; 1/sqrt(head_size) already folded into q weights.
    s = jnp.einsum('bqd,bkd->bqk', q, k, preferred_element_type=jnp.float32)

    # Causal mask from 2-D iotas, broadcast over the batch dim (no -inf arithmetic).
    row = lax.broadcasted_iota(jnp.int32, (t, t), 0)
    col = lax.broadcasted_iota(jnp.int32, (t, t), 1)
    causal = (col <= row)[None, :, :]
    s = jnp.where(causal, s, jnp.float32(-1e30))

    # Numerically stable softmax in f32; reciprocal on the otherwise-idle EUP.
    m = jnp.max(s, axis=-1, keepdims=True)
    e = jnp.exp(s - m)
    denom = jnp.sum(e, axis=-1, keepdims=True)
    p = (e * pl.reciprocal(denom, approx=True)).astype(jnp.bfloat16)

    # dropout: identity (inference semantics)

    out = jnp.einsum('bqk,bkd->bqd', p, v, preferred_element_type=jnp.float32)
    o_ref[...] = out.astype(o_ref.dtype)


def make_qkv_weight(w_key, w_query, w_value):
    """Hoisted weight prep (call once, or keep under jit so it constant-folds):
    transpose PyTorch-layout (H, C) weights to (C, H), fold 1/sqrt(head_size)
    into the query weight in f32, zero-pad the head dim to a lane multiple and
    fuse into a single (C, 3*Hp) bf16 buffer ordered [k | q | v]."""
    H, C = w_key.shape
    Hp = max(LANE, pl.cdiv(H, LANE) * LANE)
    scale = jnp.float32(H ** -0.5)

    def prep(w, s=None):
        wt = jnp.transpose(w).astype(jnp.float32)
        if s is not None:
            wt = wt * s
        return jnp.pad(wt.astype(jnp.bfloat16), ((0, 0), (0, Hp - H)))

    return jnp.concatenate([prep(w_key), prep(w_query, scale), prep(w_value)], axis=1)


def _num_tensorcores():
    """1 TensorCore per chip on v5e/v6e (lite parts); 2 on v4/v5p/v7x-style parts."""
    try:
        kind = jax.devices()[0].device_kind.lower()
    except Exception:
        return 1
    if "lite" in kind or "v5e" in kind or "v6e" in kind:
        return 1
    if "v7" in kind or "v4" in kind or "v5" in kind:
        return 2
    return 1


def _vmem_bytes_per_batch_elem(T, C, Hp):
    """Rough per-batch-element VMEM footprint (double-buffered I/O + temporaries)."""
    return (
        2 * (T * C * 2)      # x block (bf16), double-buffered
        + T * 3 * Hp * 4     # f32 fused qkv projection result
        + T * 3 * Hp * 2     # bf16 k / q / v slices
        + 2 * (T * T * 4)    # scores + exp (f32)
        + T * Hp * 4         # f32 attention-output accumulator
        + 2 * (T * Hp * 2)   # bf16 output block, double-buffered
    )


def _pick_batch_block(B, T, C, Hp):
    """Largest divisor of B that fits the VMEM budget.  On multi-TC chips, prefer
    keeping grid extent >= #TensorCores so the parallel axis can shard across
    cores; on single-TC chips the grid is a serial loop, so bigger is better."""
    weight_bytes = C * 3 * Hp * 2
    per_b = _vmem_bytes_per_batch_elem(T, C, Hp)
    max_bb = max(1, (_VMEM_BUDGET_BYTES - weight_bytes) // per_b)

    divisors = [d for d in range(1, B + 1) if B % d == 0]
    fitting = [d for d in divisors if d <= max_bb] or [1]

    n_cores = _num_tensorcores()
    if n_cores >= 2:
        multi = [d for d in fitting if B // d >= n_cores]
        pool = multi or fitting
    else:
        pool = fitting

    return max(pool)


def head_forward(x, w_qkv, head_size, *, batch_block=None):
    """x: (B, T, C).  w_qkv: fused (C, 3*Hp) bf16 weight from make_qkv_weight()."""
    B, T, C = x.shape
    Hp = w_qkv.shape[1] // 3
    assert T <= block_size
    assert w_qkv.shape[0] == C

    bb = batch_block if batch_block is not None else _pick_batch_block(B, T, C, Hp)
    assert B % bb == 0, "batch block must divide B"
    grid = (B // bb,)

    x_bf16 = x.astype(jnp.bfloat16)

    # NOTE: the weight block index is constant across the grid, so Pallas fetches
    # it only once; pl.Buffered(1) would merely drop the idle second buffer
    # allocation (~288 KB here), so the default pipeline mode is kept for
    # maximum compatibility.
    out_padded = pl.pallas_call(
        _head_kernel,
        out_shape=jax.ShapeDtypeStruct((B, T, Hp), jnp.bfloat16),
        grid_spec=pltpu.PrefetchScalarGridSpec(
            num_scalar_prefetch=0,
            grid=grid,
            in_specs=[
                pl.BlockSpec((bb, T, C), lambda i: (i, 0, 0)),
                pl.BlockSpec((C, 3 * Hp), lambda i: (0, 0)),
            ],
            out_specs=pl.BlockSpec((bb, T, Hp), lambda i: (i, 0, 0)),
        ),
        compiler_params=pltpu.CompilerParams(
            dimension_semantics=("parallel",),
            vmem_limit_bytes=_VMEM_LIMIT_BYTES,
        ),
    )(x_bf16, w_qkv)

    # Drop the zero-padded head columns (exact) and restore the input dtype.
    return out_padded[..., :head_size].astype(x.dtype)


def head_reference(x, w_key, w_query, w_value):
    """Pure-JAX f32 reference matching the PyTorch forward (eval mode)."""
    k = x @ w_key.T
    q = x @ w_query.T
    v = x @ w_value.T
    wei = (q @ jnp.swapaxes(k, -2, -1)) * (k.shape[-1] ** -0.5)
    T = x.shape[1]
    tril = jnp.tril(jnp.ones((T, T), dtype=bool))
    wei = jnp.where(tril, wei, -jnp.inf)
    wei = jax.nn.softmax(wei, axis=-1)
    return wei @ v


if __name__ == "__main__":
    # Small shapes consistent with the module: B=2, T=8 (<= block_size=128),
    # C=n_embd=384, head_size=64.
    B, T, C, H = 2, 8, n_embd, 64

    key = jax.random.PRNGKey(0)
    kx, kk, kq, kv = jax.random.split(key, 4)

    x = jax.random.normal(kx, (B, T, C), dtype=jnp.float32)

    # Deterministic Linear weights, PyTorch layout (out_features, in_features).
    bound = 1.0 / math.sqrt(C)
    w_key = jax.random.uniform(kk, (H, C), jnp.float32, -bound, bound)
    w_query = jax.random.uniform(kq, (H, C), jnp.float32, -bound, bound)
    w_value = jax.random.uniform(kv, (H, C), jnp.float32, -bound, bound)

    # Weight prep hoisted out of the per-call path: compute the fused weight once.
    w_qkv = make_qkv_weight(w_key, w_query, w_value)

    out = head_forward(x, w_qkv, H)
    out = jax.block_until_ready(out)

    ref = head_reference(x, w_key, w_query, w_value)
    assert out.shape == (B, T, H)
    # bf16 matmul operands / bf16 writeback with f32 accumulation -> relaxed tolerance.
    assert jnp.allclose(out, ref, atol=3e-2, rtol=3e-2), "mismatch vs reference"

    print("KERNEL_OK")
</pallas_src>

<mosaic_0001>
module attributes {stable_mosaic.version = 11 : i64} {
  func.func @_head_kernel(%arg0: i32, %arg1: memref<2x8x384xbf16, #tpu.memory_space<vmem>>, %arg2: memref<384x384xbf16, #tpu.memory_space<vmem>>, %arg3: memref<2x8x128xbf16, #tpu.memory_space<vmem>>) attributes {dimension_semantics = [#tpu.dimension_semantics<parallel>], iteration_bounds = array<i64: 1>, scalar_prefetch = 0 : i64, scratch_operands = 0 : i64, tpu.core_type = #tpu.core_type<tc>, window_params = [{transform_indices = @transform_0, window_bounds = array<i64: 2, 8, 384>}, {pipeline_mode = #tpu.pipeline_mode<synchronous>, transform_indices = @transform_1, window_bounds = array<i64: 384, 384>}, {transform_indices = @transform_2, window_bounds = array<i64: 2, 8, 128>}]} {
    %c0 = arith.constant 0 : index
    %c0_0 = arith.constant 0 : index
    %c0_1 = arith.constant 0 : index
    %0 = vector.load %arg1[%c0, %c0_0, %c0_1] : memref<2x8x384xbf16, #tpu.memory_space<vmem>>, vector<2x8x384xbf16>
    %1 = vector.shape_cast %0 : vector<2x8x384xbf16> to vector<16x384xbf16>
    %c0_2 = arith.constant 0 : index
    %c0_3 = arith.constant 0 : index
    %2 = vector.load %arg2[%c0_2, %c0_3] : memref<384x384xbf16, #tpu.memory_space<vmem>>, vector<384x384xbf16>
    %cst = arith.constant dense<0.000000e+00> : vector<16x384xf32>
    %3 = tpu.matmul %1, %2, %cst {dimension_numbers = #tpu.dot_dimension_numbers<[1], [0], [0], [1], [0, 0, 1, 1], [], []>} : vector<16x384xbf16>, vector<384x384xbf16>, vector<16x384xf32> -> vector<16x384xf32>
    %4 = vector.extract_strided_slice %3 {offsets = [0, 0], sizes = [16, 128], strides = [1, 1]} : vector<16x384xf32> to vector<16x128xf32>
    %5 = arith.truncf %4 : vector<16x128xf32> to vector<16x128xbf16>
    %6 = vector.shape_cast %5 : vector<16x128xbf16> to vector<2x8x128xbf16>
    %7 = vector.extract_strided_slice %3 {offsets = [0, 128], sizes = [16, 128], strides = [1, 1]} : vector<16x384xf32> to vector<16x128xf32>
    %8 = arith.truncf %7 : vector<16x128xf32> to vector<16x128xbf16>
    %9 = vector.shape_cast %8 : vector<16x128xbf16> to vector<2x8x128xbf16>
    %10 = vector.extract_strided_slice %3 {offsets = [0, 256], sizes = [16, 128], strides = [1, 1]} : vector<16x384xf32> to vector<16x128xf32>
    %11 = arith.truncf %10 : vector<16x128xf32> to vector<16x128xbf16>
    %12 = vector.shape_cast %11 : vector<16x128xbf16> to vector<2x8x128xbf16>
    "tpu.trace_start"() <{level = 10 : i32, message = "bqd,bkd->bqk"}> : () -> ()
    %cst_4 = arith.constant dense<0.000000e+00> : vector<2x8x8xf32>
    %13 = tpu.matmul %9, %6, %cst_4 {dimension_numbers = #tpu.dot_dimension_numbers<[2], [2], [1], [1], [0, 0, 0, 1, 1, 1], [0], [0]>} : vector<2x8x128xbf16>, vector<2x8x128xbf16>, vector<2x8x8xf32> -> vector<2x8x8xf32>
    "tpu.trace_stop"() : () -> ()
    %14 = tpu.iota {dimensions = array<i32: 0>} : vector<8x8xi32>
    %15 = tpu.iota {dimensions = array<i32: 1>} : vector<8x8xi32>
    %16 = arith.cmpi sle, %15, %14 : vector<8x8xi32>
    %17 = vector.shape_cast %16 : vector<8x8xi1> to vector<1x8x8xi1>
    %cst_5 = arith.constant -1.000000e+30 : f32
    %18 = vector.shape_cast %17 : vector<1x8x8xi1> to vector<1x8x8xi1>
    %19 = vector.broadcast %18 : vector<1x8x8xi1> to vector<2x8x8xi1>
    %20 = vector.broadcast %cst_5 : f32 to vector<2x8x8xf32>
    %21 = arith.select %19, %13, %20 : vector<2x8x8xi1>, vector<2x8x8xf32>
    %cst_6 = arith.constant dense<0xFF800000> : vector<2x8xf32>
    %22 = vector.multi_reduction <maximumf>, %21, %cst_6 [2] : vector<2x8x8xf32> to vector<2x8xf32>
    %23 = vector.shape_cast %22 : vector<2x8xf32> to vector<2x8x1xf32>
    %24 = vector.broadcast %23 : vector<2x8x1xf32> to vector<2x8x8xf32>
    %25 = arith.subf %21, %24 : vector<2x8x8xf32>
    %26 = math.exp %25 : vector<2x8x8xf32>
    %cst_7 = arith.constant dense<0.000000e+00> : vector<2x8xf32>
    %27 = vector.multi_reduction <add>, %26, %cst_7 [2] : vector<2x8x8xf32> to vector<2x8xf32>
    %28 = vector.shape_cast %27 : vector<2x8xf32> to vector<2x8x1xf32>
    %29 = tpu.reciprocal %28 {approx = true} : vector<2x8x1xf32> -> vector<2x8x1xf32>
    %30 = vector.broadcast %29 : vector<2x8x1xf32> to vector<2x8x8xf32>
    %31 = arith.mulf %26, %30 : vector<2x8x8xf32>
    %32 = arith.truncf %31 : vector<2x8x8xf32> to vector<2x8x8xbf16>
    "tpu.trace_start"() <{level = 10 : i32, message = "bqk,bkd->bqd"}> : () -> ()
    %cst_8 = arith.constant dense<0.000000e+00> : vector<2x8x128xf32>
    %33 = tpu.matmul %32, %12, %cst_8 {dimension_numbers = #tpu.dot_dimension_numbers<[2], [1], [1], [2], [0, 0, 0, 1, 1, 2], [0], [0]>} : vector<2x8x8xbf16>, vector<2x8x128xbf16>, vector<2x8x128xf32> -> vector<2x8x128xf32>
    "tpu.trace_stop"() : () -> ()
    %34 = arith.truncf %33 : vector<2x8x128xf32> to vector<2x8x128xbf16>
    %c0_9 = arith.constant 0 : index
    %c0_10 = arith.constant 0 : index
    %c0_11 = arith.constant 0 : index
    %35 = vector.load %arg3[%c0_9, %c0_10, %c0_11] : memref<2x8x128xbf16, #tpu.memory_space<vmem>>, vector<2x8x128xbf16>
    tpu.vector_store %arg3[%c0_9, %c0_10, %c0_11], %34 {strides = array<i32>} : memref<2x8x128xbf16, #tpu.memory_space<vmem>>, vector<2x8x128xbf16>,
    return
  }
  func.func @transform_0(%arg0: i32) -> (i32, i32, i32) {
    %c0_i32 = arith.constant 0 : i32
    %c0_i32_0 = arith.constant 0 : i32
    %c0_i32_1 = arith.constant 0 : i32
    return %arg0, %c0_i32, %c0_i32_0 : i32, i32, i32
  }
  func.func @transform_1(%arg0: i32) -> (i32, i32) {
    %c0_i32 = arith.constant 0 : i32
    %c0_i32_0 = arith.constant 0 : i32
    %c0_i32_1 = arith.constant 0 : i32
    return %c0_i32, %c0_i32_0 : i32, i32
  }
  func.func @transform_2(%arg0: i32) -> (i32, i32, i32) {
    %c0_i32 = arith.constant 0 : i32
    %c0_i32_0 = arith.constant 0 : i32
    %c0_i32_1 = arith.constant 0 : i32
    return %arg0, %c0_i32, %c0_i32_0 : i32, i32, i32
  }
}

</mosaic_0001>

<llo_original>
// kernel: tpu_custom_call.1
$region0: #{tpu_custom_call.1}
  #allocation0 [shape = 'u32[]', space=smem, size = 0x4, offset = 0x4, fixed_abs, tag = 'smem constant byte address 0x4 - core index']
  #allocation1 [shape = 'u32[144,128]{1,0:T(1,128)}', space=vmem, size = 0x12000, scoped, tag = 'internal scratch']
  %s0 = inlined_call_operand.hbm [shape: bf16[2,8,384], index: 0, kind: input, shape index: {}]
  %s1 = inlined_call_operand.hbm [shape: bf16[384,384], index: 1, kind: input, shape index: {}]
  %s2 = inlined_call_operand.hbm [shape: bf16[2,8,128], index: 2, kind: output, shape index: {}]
  %s3 = sld [smem:[#allocation0]]
  $region26: #{tpu_custom_call.1} parent=0
    _
  %s5 = ssub.s32 1, %s3
  %s6 = scalar_select 0, %s5, %s3
  $region1: #{tpu_custom_call.1} parent=0
    #allocation2 [shape = 'u8[12288]{0}', space=vmem, size = 0x3000, scoped, tag = 'input window, operand 0, single buffered']
    #allocation3 [shape = 's32[1]{0}', space=sflag, size = 0x4, scoped, tag = 'scoped memory for tpu_custom_call.1']
    #allocation4 [shape = 's32[1]{0}', space=sflag, size = 0x4, scoped, tag = 'scoped memory for tpu_custom_call.1']
    #allocation5 [shape = 'u8[294912]{0}', space=vmem, size = 0x48000, scoped, tag = 'input window, operand 1, single buffered']
    #allocation6 [shape = 's32[1]{0}', space=sflag, size = 0x4, scoped, tag = 'scoped memory for tpu_custom_call.1']
    #allocation7 [shape = 'u8[4096]{0}', space=vmem, size = 0x1000, scoped, tag = 'output window, operand 0, single buffered']
    %7 = vsyncpa [#allocation3], 0
    %8 = vsyncpa [#allocation6], 0
    %9 = vsyncpa [#allocation4], 0
    // Predicated region
    $region2: #{tpu_custom_call.1} parent=1 // pred_check
      _
    $region3: #{tpu_custom_call.1} parent=1 // pred_check_branch
      %11 = sbr.rel (0) target = $region5
    $region4: #{tpu_custom_call.1} parent=1 // pred_region
      %s13 = ssub.s32 384, 384
      %14 = vsyncadd [#allocation3], %s13
      %s15 = sshll.u32 [#allocation2], 4
      %s16 = int_to_ptr.vmem [resolvable:$true] %s15
      %21 = dma.hbm_to_vmem [thread:$0]  %s0, 384, %s16, [#allocation3], 192, 192, 12
    $region5: #{tpu_custom_call.1} parent=1 // pred_fallthru
      _
    // Predicated region
    $region6: #{tpu_custom_call.1} parent=1 // pred_check
      _
    $region7: #{tpu_custom_call.1} parent=1 // pred_check_branch
      %23 = sbr.rel (0) target = $region9
    $region8: #{tpu_custom_call.1} parent=1 // pred_region
      %s25 = ssub.s32 9216, 9216
      %26 = vsyncadd [#allocation6], %s25
      %s27 = sshll.u32 [#allocation5], 4
      %s28 = int_to_ptr.vmem [resolvable:$true] %s27
      %33 = dma.hbm_to_vmem [thread:$0]  %s1, 9216, %s28, [#allocation6], 192, 192, 12
    $region9: #{tpu_custom_call.1} parent=1 // pred_fallthru
      _
    // Predicated region
    $region10: #{tpu_custom_call.1} parent=1 // pred_check
      _
    $region11: #{tpu_custom_call.1} parent=1 // pred_check_branch
      %35 = sbr.rel (0) target = $region13
    $region12: #{tpu_custom_call.1} parent=1 // pred_region
      %36 = dma.done [#allocation3], 384
    $region13: #{tpu_custom_call.1} parent=1 // pred_fallthru
      _
    // Predicated region
    $region14: #{tpu_custom_call.1} parent=1 // pred_check
      _
    $region15: #{tpu_custom_call.1} parent=1 // pred_check_branch
      %38 = sbr.rel (0) target = $region17
    $region16: #{tpu_custom_call.1} parent=1 // pred_region
      %39 = dma.done [#allocation6], 9216
    $region17: #{tpu_custom_call.1} parent=1 // pred_fallthru
      _
    %v41 = vld [vmem:[#allocation2] sm:$0xff]
    %v42 = vld [vmem:[#allocation2 + $0x8] sm:$0xf]
    %v43 = vld [vmem:[#allocation2 + $0xc] sm:$0xff]
    %v44 = vld [vmem:[#allocation2 + $0x14] sm:$0xf]
    %v45 = vld [vmem:[#allocation5] sm:$0xff]
    %v46 = vld [vmem:[#allocation5 + $0x8] sm:$0xf]
    %v47 = vld [vmem:[#allocation5 + $0xc] sm:$0xff]
    %v48 = vld [vmem:[#allocation5 + $0x14] sm:$0xf]
    %v49 = vld [vmem:[#allocation5 + $0x18] sm:$0xff]
    %v50 = vld [vmem:[#allocation5 + $0x20] sm:$0xf]
    %v51 = vld [vmem:[#allocation5 + $0x24] sm:$0xff]
    %v52 = vld [vmem:[#allocation5 + $0x2c] sm:$0xf]
    %v53 = vld [vmem:[#allocation5 + $0x30] sm:$0xff]
    %v54 = vld [vmem:[#allocation5 + $0x38] sm:$0xf]
    %v55 = vld [vmem:[#allocation5 + $0x3c] sm:$0xff]
    %v56 = vld [vmem:[#allocation5 + $0x44] sm:$0xf]
    %v57 = vld [vmem:[#allocation5 + $0x48] sm:$0xff]
    %v58 = vld [vmem:[#allocation5 + $0x50] sm:$0xf]
    %v59 = vld [vmem:[#allocation5 + $0x54] sm:$0xff]
    %v60 = vld [vmem:[#allocation5 + $0x5c] sm:$0xf]
    %v61 = vld [vmem:[#allocation5 + $0x60] sm:$0xff]
    %v62 = vld [vmem:[#allocation5 + $0x68] sm:$0xf]
    %v63 = vld [vmem:[#allocation5 + $0x6c] sm:$0xff]
    %v64 = vld [vmem:[#allocation5 + $0x74] sm:$0xf]
    %v65 = vld [vmem:[#allocation5 + $0x78] sm:$0xff]
    %v66 = vld [vmem:[#allocation5 + $0x80] sm:$0xf]
    %v67 = vld [vmem:[#allocation5 + $0x84] sm:$0xff]
    %v68 = vld [vmem:[#allocation5 + $0x8c] sm:$0xf]
    %v69 = vld [vmem:[#allocation5 + $0x90] sm:$0xff]
    %v70 = vld [vmem:[#allocation5 + $0x98] sm:$0xf]
    %v71 = vld [vmem:[#allocation5 + $0x9c] sm:$0xff]
    %v72 = vld [vmem:[#allocation5 + $0xa4] sm:$0xf]
    %v73 = vld [vmem:[#allocation5 + $0xa8] sm:$0xff]
    %v74 = vld [vmem:[#allocation5 + $0xb0] sm:$0xf]
    %v75 = vld [vmem:[#allocation5 + $0xb4] sm:$0xff]
    %v76 = vld [vmem:[#allocation5 + $0xbc] sm:$0xf]
    %v77 = vld [vmem:[#allocation5 + $0xc0] sm:$0xff]
    %v78 = vld [vmem:[#allocation5 + $0xc8] sm:$0xf]
    %v79 = vld [vmem:[#allocation5 + $0xcc] sm:$0xff]
    %v80 = vld [vmem:[#allocation5 + $0xd4] sm:$0xf]
    %v81 = vld [vmem:[#allocation5 + $0xd8] sm:$0xff]
    %v82 = vld [vmem:[#allocation5 + $0xe0] sm:$0xf]
    %v83 = vld [vmem:[#allocation5 + $0xe4] sm:$0xff]
    %v84 = vld [vmem:[#allocation5 + $0xec] sm:$0xf]
    %v85 = vld [vmem:[#allocation5 + $0xf0] sm:$0xff]
    %v86 = vld [vmem:[#allocation5 + $0xf8] sm:$0xf]
    %v87 = vld [vmem:[#allocation5 + $0xfc] sm:$0xff]
    %v88 = vld [vmem:[#allocation5 + $0x104] sm:$0xf]
    %v89 = vld [vmem:[#allocation5 + $0x108] sm:$0xff]
    %v90 = vld [vmem:[#allocation5 + $0x110] sm:$0xf]
    %v91 = vld [vmem:[#allocation5 + $0x114] sm:$0xff]
    %v92 = vld [vmem:[#allocation5 + $0x11c] sm:$0xf]
    %v93 = vld [vmem:[#allocation5 + $0x120] sm:$0xff]
    %v94 = vld [vmem:[#allocation5 + $0x128] sm:$0xf]
    %v95 = vld [vmem:[#allocation5 + $0x12c] sm:$0xff]
    %v96 = vld [vmem:[#allocation5 + $0x134] sm:$0xf]
    %v97 = vld [vmem:[#allocation5 + $0x138] sm:$0xff]
    %v98 = vld [vmem:[#allocation5 + $0x140] sm:$0xf]
    %v99 = vld [vmem:[#allocation5 + $0x144] sm:$0xff]
    %v100 = vld [vmem:[#allocation5 + $0x14c] sm:$0xf]
    %v101 = vld [vmem:[#allocation5 + $0x150] sm:$0xff]
    %v102 = vld [vmem:[#allocation5 + $0x158] sm:$0xf]
    %v103 = vld [vmem:[#allocation5 + $0x15c] sm:$0xff]
    %v104 = vld [vmem:[#allocation5 + $0x164] sm:$0xf]
    %v105 = vld [vmem:[#allocation5 + $0x168] sm:$0xff]
    %v106 = vld [vmem:[#allocation5 + $0x170] sm:$0xf]
    %v107 = vld [vmem:[#allocation5 + $0x174] sm:$0xff]
    %v108 = vld [vmem:[#allocation5 + $0x17c] sm:$0xf]
    %v109 = vld [vmem:[#allocation5 + $0x180] sm:$0xff]
    %v110 = vld [vmem:[#allocation5 + $0x188] sm:$0xf]
    %v111 = vld [vmem:[#allocation5 + $0x18c] sm:$0xff]
    %v112 = vld [vmem:[#allocation5 + $0x194] sm:$0xf]
    %v113 = vld [vmem:[#allocation5 + $0x198] sm:$0xff]
    %v114 = vld [vmem:[#allocation5 + $0x1a0] sm:$0xf]
    %v115 = vld [vmem:[#allocation5 + $0x1a4] sm:$0xff]
    %v116 = vld [vmem:[#allocation5 + $0x1ac] sm:$0xf]
    %v117 = vld [vmem:[#allocation5 + $0x1b0] sm:$0xff]
    %v118 = vld [vmem:[#allocation5 + $0x1b8] sm:$0xf]
    %v119 = vld [vmem:[#allocation5 + $0x1bc] sm:$0xff]
    %v120 = vld [vmem:[#allocation5 + $0x1c4] sm:$0xf]
    %v121 = vld [vmem:[#allocation5 + $0x1c8] sm:$0xff]
    %v122 = vld [vmem:[#allocation5 + $0x1d0] sm:$0xf]
    %v123 = vld [vmem:[#allocation5 + $0x1d4] sm:$0xff]
    %v124 = vld [vmem:[#allocation5 + $0x1dc] sm:$0xf]
    %v125 = vld [vmem:[#allocation5 + $0x1e0] sm:$0xff]
    %v126 = vld [vmem:[#allocation5 + $0x1e8] sm:$0xf]
    %v127 = vld [vmem:[#allocation5 + $0x1ec] sm:$0xff]
    %v128 = vld [vmem:[#allocation5 + $0x1f4] sm:$0xf]
    %v129 = vld [vmem:[#allocation5 + $0x1f8] sm:$0xff]
    %v130 = vld [vmem:[#allocation5 + $0x200] sm:$0xf]
    %v131 = vld [vmem:[#allocation5 + $0x204] sm:$0xff]
    %v132 = vld [vmem:[#allocation5 + $0x20c] sm:$0xf]
    %v133 = vld [vmem:[#allocation5 + $0x210] sm:$0xff]
    %v134 = vld [vmem:[#allocation5 + $0x218] sm:$0xf]
    %v135 = vld [vmem:[#allocation5 + $0x21c] sm:$0xff]
    %v136 = vld [vmem:[#allocation5 + $0x224] sm:$0xf]
    %v137 = vld [vmem:[#allocation5 + $0x228] sm:$0xff]
    %v138 = vld [vmem:[#allocation5 + $0x230] sm:$0xf]
    %v139 = vld [vmem:[#allocation5 + $0x234] sm:$0xff]
    %v140 = vld [vmem:[#allocation5 + $0x23c] sm:$0xf]
    %v145 = vunpack.c.l.b16 %v41
    %v146 = vunpack.c.h.b16 %v41
    %v147 = vunpack.c.l.b16 %v42
    %v148 = vunpack.c.l.b16 %v43
    %v149 = vunpack.c.h.b16 %v43
    %v150 = vunpack.c.l.b16 %v44
    %v151 = vpack.c.b16 %v148, %v145
    %v152 = vpack.c.b16 %v149, %v146
    %v153 = vpack.c.b16 %v150, %v147
    %v253 = vunpack.c.l.b16 %v45
    %v254 = vunpack.c.h.b16 %v45
    %v255 = vunpack.c.l.b16 %v46
    %v256 = vunpack.c.l.b16 %v47
    %v257 = vunpack.c.h.b16 %v47
    %v258 = vunpack.c.l.b16 %v48
    %v259 = vunpack.c.l.b16 %v49
    %v260 = vunpack.c.h.b16 %v49
    %v261 = vunpack.c.l.b16 %v50
    %v262 = vunpack.c.l.b16 %v51
    %v263 = vunpack.c.h.b16 %v51
    %v264 = vunpack.c.l.b16 %v52
    %v265 = vunpack.c.l.b16 %v53
    %v266 = vunpack.c.h.b16 %v53
    %v267 = vunpack.c.l.b16 %v54
    %v268 = vunpack.c.l.b16 %v55
    %v269 = vunpack.c.h.b16 %v55
    %v270 = vunpack.c.l.b16 %v56
    %v271 = vunpack.c.l.b16 %v57
    %v272 = vunpack.c.h.b16 %v57
    %v273 = vunpack.c.l.b16 %v58
    %v274 = vunpack.c.l.b16 %v59
    %v275 = vunpack.c.h.b16 %v59
    %v276 = vunpack.c.l.b16 %v60
    %v277 = vunpack.c.l.b16 %v61
    %v278 = vunpack.c.h.b16 %v61
    %v279 = vunpack.c.l.b16 %v62
    %v280 = vunpack.c.l.b16 %v63
    %v281 = vunpack.c.h.b16 %v63
    %v282 = vunpack.c.l.b16 %v64
    %v283 = vunpack.c.l.b16 %v65
    %v284 = vunpack.c.h.b16 %v65
    %v285 = vunpack.c.l.b16 %v66
    %v286 = vunpack.c.l.b16 %v67
    %v287 = vunpack.c.h.b16 %v67
    %v288 = vunpack.c.l.b16 %v68
    %v289 = vunpack.c.l.b16 %v69
    %v290 = vunpack.c.h.b16 %v69
    %v291 = vunpack.c.l.b16 %v70
    %v292 = vunpack.c.l.b16 %v71
    %v293 = vunpack.c.h.b16 %v71
    %v294 = vunpack.c.l.b16 %v72
    %v295 = vunpack.c.l.b16 %v73
    %v296 = vunpack.c.h.b16 %v73
    %v297 = vunpack.c.l.b16 %v74
    %v298 = vunpack.c.l.b16 %v75
    %v299 = vunpack.c.h.b16 %v75
    %v300 = vunpack.c.l.b16 %v76
    %v301 = vunpack.c.l.b16 %v77
    %v302 = vunpack.c.h.b16 %v77
    %v303 = vunpack.c.l.b16 %v78
    %v304 = vunpack.c.l.b16 %v79
    %v305 = vunpack.c.h.b16 %v79
    %v306 = vunpack.c.l.b16 %v80
    %v307 = vunpack.c.l.b16 %v81
    %v308 = vunpack.c.h.b16 %v81
    %v309 = vunpack.c.l.b16 %v82
    %v310 = vunpack.c.l.b16 %v83
    %v311 = vunpack.c.h.b16 %v83
    %v312 = vunpack.c.l.b16 %v84
    %v313 = vunpack.c.l.b16 %v85
    %v314 = vunpack.c.h.b16 %v85
    %v315 = vunpack.c.l.b16 %v86
    %v316 = vunpack.c.l.b16 %v87
    %v317 = vunpack.c.h.b16 %v87
    %v318 = vunpack.c.l.b16 %v88
    %v319 = vunpack.c.l.b16 %v89
    %v320 = vunpack.c.h.b16 %v89
    %v321 = vunpack.c.l.b16 %v90
    %v322 = vunpack.c.l.b16 %v91
    %v323 = vunpack.c.h.b16 %v91
    %v324 = vunpack.c.l.b16 %v92
    %v325 = vunpack.c.l.b16 %v93
    %v326 = vunpack.c.h.b16 %v93
    %v327 = vunpack.c.l.b16 %v94
    %v328 = vunpack.c.l.b16 %v95
    %v329 = vunpack.c.h.b16 %v95
    %v330 = vunpack.c.l.b16 %v96
    %v331 = vunpack.c.l.b16 %v97
    %v332 = vunpack.c.h.b16 %v97
    %v333 = vunpack.c.l.b16 %v98
    %v334 = vunpack.c.l.b16 %v99
    %v335 = vunpack.c.h.b16 %v99
    %v336 = vunpack.c.l.b16 %v100
    %v337 = vunpack.c.l.b16 %v101
    %v338 = vunpack.c.h.b16 %v101
    %v339 = vunpack.c.l.b16 %v102
    %v340 = vunpack.c.l.b16 %v103
    %v341 = vunpack.c.h.b16 %v103
    %v342 = vunpack.c.l.b16 %v104
    %v343 = vunpack.c.l.b16 %v105
    %v344 = vunpack.c.h.b16 %v105
    %v345 = vunpack.c.l.b16 %v106
    %v346 = vunpack.c.l.b16 %v107
    %v347 = vunpack.c.h.b16 %v107
    %v348 = vunpack.c.l.b16 %v108
    %v349 = vunpack.c.l.b16 %v109
    %v350 = vunpack.c.h.b16 %v109
    %v351 = vunpack.c.l.b16 %v110
    %v352 = vunpack.c.l.b16 %v111
    %v353 = vunpack.c.h.b16 %v111
    %v354 = vunpack.c.l.b16 %v112
    %v355 = vunpack.c.l.b16 %v113
    %v356 = vunpack.c.h.b16 %v113
    %v357 = vunpack.c.l.b16 %v114
    %v358 = vunpack.c.l.b16 %v115
    %v359 = vunpack.c.h.b16 %v115
    %v360 = vunpack.c.l.b16 %v116
    %v361 = vunpack.c.l.b16 %v117
    %v362 = vunpack.c.h.b16 %v117
    %v363 = vunpack.c.l.b16 %v118
    %v364 = vunpack.c.l.b16 %v119
    %v365 = vunpack.c.h.b16 %v119
    %v366 = vunpack.c.l.b16 %v120
    %v367 = vunpack.c.l.b16 %v121
    %v368 = vunpack.c.h.b16 %v121
    %v369 = vunpack.c.l.b16 %v122
    %v370 = vunpack.c.l.b16 %v123
    %v371 = vunpack.c.h.b16 %v123
    %v372 = vunpack.c.l.b16 %v124
    %v373 = vunpack.c.l.b16 %v125
    %v374 = vunpack.c.h.b16 %v125
    %v375 = vunpack.c.l.b16 %v126
    %v376 = vunpack.c.l.b16 %v127
    %v377 = vunpack.c.h.b16 %v127
    %v378 = vunpack.c.l.b16 %v128
    %v379 = vunpack.c.l.b16 %v129
    %v380 = vunpack.c.h.b16 %v129
    %v381 = vunpack.c.l.b16 %v130
    %v382 = vunpack.c.l.b16 %v131
    %v383 = vunpack.c.h.b16 %v131
    %v384 = vunpack.c.l.b16 %v132
    %v385 = vunpack.c.l.b16 %v133
    %v386 = vunpack.c.h.b16 %v133
    %v387 = vunpack.c.l.b16 %v134
    %v388 = vunpack.c.l.b16 %v135
    %v389 = vunpack.c.h.b16 %v135
    %v390 = vunpack.c.l.b16 %v136
    %v391 = vunpack.c.l.b16 %v137
    %v392 = vunpack.c.h.b16 %v137
    %v393 = vunpack.c.l.b16 %v138
    %v394 = vunpack.c.l.b16 %v139
    %v395 = vunpack.c.h.b16 %v139
    %v396 = vunpack.c.l.b16 %v140
    %v397 = vpack.c.b16 %v256, %v253
    %v398 = vpack.c.b16 %v257, %v254
    %v399 = vpack.c.b16 %v258, %v255
    %v400 = vpack.c.b16 %v262, %v259
    %v401 = vpack.c.b16 %v263, %v260
    %v402 = vpack.c.b16 %v264, %v261
    %v403 = vpack.c.b16 %v268, %v265
    %v404 = vpack.c.b16 %v269, %v266
    %v405 = vpack.c.b16 %v270, %v267
    %v406 = vpack.c.b16 %v274, %v271
    %v407 = vpack.c.b16 %v275, %v272
    %v408 = vpack.c.b16 %v276, %v273
    %v409 = vpack.c.b16 %v280, %v277
    %v410 = vpack.c.b16 %v281, %v278
    %v411 = vpack.c.b16 %v282, %v279
    %v412 = vpack.c.b16 %v286, %v283
    %v413 = vpack.c.b16 %v287, %v284
    %v414 = vpack.c.b16 %v288, %v285
    %v415 = vpack.c.b16 %v292, %v289
    %v416 = vpack.c.b16 %v293, %v290
    %v417 = vpack.c.b16 %v294, %v291
    %v418 = vpack.c.b16 %v298, %v295
    %v419 = vpack.c.b16 %v299, %v296
    %v420 = vpack.c.b16 %v300, %v297
    %v421 = vpack.c.b16 %v304, %v301
    %v422 = vpack.c.b16 %v305, %v302
    %v423 = vpack.c.b16 %v306, %v303
    %v424 = vpack.c.b16 %v310, %v307
    %v425 = vpack.c.b16 %v311, %v308
    %v426 = vpack.c.b16 %v312, %v309
    %v427 = vpack.c.b16 %v316, %v313
    %v428 = vpack.c.b16 %v317, %v314
    %v429 = vpack.c.b16 %v318, %v315
    %v430 = vpack.c.b16 %v322, %v319
    %v431 = vpack.c.b16 %v323, %v320
    %v432 = vpack.c.b16 %v324, %v321
    %v433 = vpack.c.b16 %v328, %v325
    %v434 = vpack.c.b16 %v329, %v326
    %v435 = vpack.c.b16 %v330, %v327
    %v436 = vpack.c.b16 %v334, %v331
    %v437 = vpack.c.b16 %v335, %v332
    %v438 = vpack.c.b16 %v336, %v333
    %v439 = vpack.c.b16 %v340, %v337
    %v440 = vpack.c.b16 %v341, %v338
    %v441 = vpack.c.b16 %v342, %v339
    %v442 = vpack.c.b16 %v346, %v343
    %v443 = vpack.c.b16 %v347, %v344
    %v444 = vpack.c.b16 %v348, %v345
    %v445 = vpack.c.b16 %v352, %v349
    %v446 = vpack.c.b16 %v353, %v350
    %v447 = vpack.c.b16 %v354, %v351
    %v448 = vpack.c.b16 %v358, %v355
    %v449 = vpack.c.b16 %v359, %v356
    %v450 = vpack.c.b16 %v360, %v357
    %v451 = vpack.c.b16 %v364, %v361
    %v452 = vpack.c.b16 %v365, %v362
    %v453 = vpack.c.b16 %v366, %v363
    %v454 = vpack.c.b16 %v370, %v367
    %v455 = vpack.c.b16 %v371, %v368
    %v456 = vpack.c.b16 %v372, %v369
    %v457 = vpack.c.b16 %v376, %v373
    %v458 = vpack.c.b16 %v377, %v374
    %v459 = vpack.c.b16 %v378, %v375
    %v460 = vpack.c.b16 %v382, %v379
    %v461 = vpack.c.b16 %v383, %v380
    %v462 = vpack.c.b16 %v384, %v381
    %v463 = vpack.c.b16 %v388, %v385
    %v464 = vpack.c.b16 %v389, %v386
    %v465 = vpack.c.b16 %v390, %v387
    %v466 = vpack.c.b16 %v394, %v391
    %v467 = vpack.c.b16 %v395, %v392
    %v468 = vpack.c.b16 %v396, %v393
    %541 = vmatprep.subr.bf16.mxu0 %v398
    %542 = vmatpush1.bf16.msra.mxu0 %v397
    %543 = vmatprep.subr.bf16.mxu0 %v401
    %544 = vmatpush1.bf16.msra.mxu0 %v400
    %545 = vmatprep.subr.bf16.mxu0 %v404
    %546 = vmatpush1.bf16.msra.mxu0 %v403
    %547 = vmatprep.subr.bf16.mxu0 %v407
    %548 = vmatpush1.bf16.msra.mxu0 %v406
    %549 = vmatprep.subr.bf16.mxu0 %v410
    %550 = vmatpush1.bf16.msra.mxu0 %v409
    %551 = vmatprep.subr.bf16.mxu0 %v413
    %552 = vmatpush1.bf16.msra.mxu0 %v412
    %553 = vmatprep.subr.bf16.mxu0 %v416
    %554 = vmatpush1.bf16.msra.mxu0 %v415
    %555 = vmatprep.subr.bf16.mxu0 %v419
    %556 = vmatpush1.bf16.msra.mxu0 %v418
    %557 = vmatprep.subr.bf16.mxu0 %v422
    %558 = vmatpush1.bf16.msra.mxu0 %v421
    %559 = vmatprep.subr.bf16.mxu0 %v425
    %560 = vmatpush1.bf16.msra.mxu0 %v424
    %561 = vmatprep.subr.bf16.mxu0 %v428
    %562 = vmatpush1.bf16.msra.mxu0 %v427
    %563 = vmatprep.subr.bf16.mxu0 %v431
    %564 = vmatpush1.bf16.msra.mxu0 %v430
    %565 = vmatprep.subr.bf16.mxu0 %v434
    %566 = vmatpush1.bf16.msra.mxu0 %v433
    %567 = vmatprep.subr.bf16.mxu0 %v437
    %568 = vmatpush1.bf16.msra.mxu0 %v436
    %569 = vmatprep.subr.bf16.mxu0 %v440
    %570 = vmatpush1.bf16.msra.mxu0 %v439
    %571 = vmatprep.subr.bf16.mxu0 %v443
    %572 = vmatpush1.bf16.msra.mxu0 %v442
    %573 = vmatprep.mubr.bf16.mxu0 %v152
    %574 = vmatmul.mubr.bf16.gmra.mrb[0].mxu0 %v151
    %v575 = vpop.f32.mrb[0].mxu0
    %v576 = vadd.f32 0.0, %v575
    %v577 = vpop.f32.mrb[0].mxu0
    %v578 = vadd.f32 0.0, %v577
    %v579 = vpop.f32.mrb[0].mxu0
    %v580 = vadd.f32 0.0, %v579
    %v581 = vpop.f32.mrb[0].mxu0
    %v582 = vadd.f32 0.0, %v581
    %583 = vdwg.mxu0
    %584 = vmatprep.subr.bf16.mxu0 %v446
    %585 = vmatpush1.bf16.msra.mxu0 %v445
    %586 = vmatprep.subr.bf16.mxu0 %v449
    %587 = vmatpush1.bf16.msra.mxu0 %v448
    %588 = vmatprep.subr.bf16.mxu0 %v452
    %589 = vmatpush1.bf16.msra.mxu0 %v451
    %590 = vmatprep.subr.bf16.mxu0 %v455
    %591 = vmatpush1.bf16.msra.mxu0 %v454
    %592 = vmatprep.subr.bf16.mxu0 %v458
    %593 = vmatpush1.bf16.msra.mxu0 %v457
    %594 = vmatprep.subr.bf16.mxu0 %v461
    %595 = vmatpush1.bf16.msra.mxu0 %v460
    %596 = vmatprep.subr.bf16.mxu0 %v464
    %597 = vmatpush1.bf16.msra.mxu0 %v463
    %598 = vmatprep.subr.bf16.mxu0 %v467
    %599 = vmatpush1.bf16.msra.mxu0 %v466
    %600 = vmatprep.subr.bf16.mxu0 0
    %601 = vmatpush1.bf16.msra.mxu0 0
    %602 = vmatprep.subr.bf16.mxu0 0
    %603 = vmatpush1.bf16.msra.mxu0 0
    %604 = vmatprep.subr.bf16.mxu0 0
    %605 = vmatpush1.bf16.msra.mxu0 0
    %606 = vmatprep.subr.bf16.mxu0 0
    %607 = vmatpush1.bf16.msra.mxu0 0
    %608 = vmatprep.subr.bf16.mxu0 0
    %609 = vmatpush1.bf16.msra.mxu0 0
    %610 = vmatprep.subr.bf16.mxu0 0
    %611 = vmatpush1.bf16.msra.mxu0 0
    %612 = vmatprep.subr.bf16.mxu0 0
    %613 = vmatpush1.bf16.msra.mxu0 0
    %614 = vmatprep.subr.bf16.mxu0 0
    %615 = vmatpush1.bf16.msra.mxu0 0
    %616 = vmatprep.mubr.bf16.mxu0 0
    %617 = vmatmul.mubr.bf16.gmra.mrb[0].mxu0 %v153
    %v618 = vpop.f32.mrb[0].mxu0
    %v619 = vadd.f32 %v576, %v618
    %v620 = vpop.f32.mrb[0].mxu0
    %v621 = vadd.f32 %v578, %v620
    %v622 = vpop.f32.mrb[0].mxu0
    %v623 = vadd.f32 %v580, %v622
    %v624 = vpop.f32.mrb[0].mxu0
    %v625 = vadd.f32 %v582, %v624
    %626 = vdwg.mxu0
    %627 = vmatprep.subr.bf16.mxu0 0
    %628 = vmatpush1.bf16.msra.mxu0 %v399
    %629 = vmatprep.subr.bf16.mxu0 0
    %630 = vmatpush1.bf16.msra.mxu0 %v402
    %631 = vmatprep.subr.bf16.mxu0 0
    %632 = vmatpush1.bf16.msra.mxu0 %v405
    %633 = vmatprep.subr.bf16.mxu0 0
    %634 = vmatpush1.bf16.msra.mxu0 %v408
    %635 = vmatprep.subr.bf16.mxu0 0
    %636 = vmatpush1.bf16.msra.mxu0 %v411
    %637 = vmatprep.subr.bf16.mxu0 0
    %638 = vmatpush1.bf16.msra.mxu0 %v414
    %639 = vmatprep.subr.bf16.mxu0 0
    %640 = vmatpush1.bf16.msra.mxu0 %v417
    %641 = vmatprep.subr.bf16.mxu0 0
    %642 = vmatpush1.bf16.msra.mxu0 %v420
    %643 = vmatprep.subr.bf16.mxu0 0
    %644 = vmatpush1.bf16.msra.mxu0 %v423
    %645 = vmatprep.subr.bf16.mxu0 0
    %646 = vmatpush1.bf16.msra.mxu0 %v426
    %647 = vmatprep.subr.bf16.mxu0 0
    %648 = vmatpush1.bf16.msra.mxu0 %v429
    %649 = vmatprep.subr.bf16.mxu0 0
    %650 = vmatpush1.bf16.msra.mxu0 %v432
    %651 = vmatprep.subr.bf16.mxu0 0
    %652 = vmatpush1.bf16.msra.mxu0 %v435
    %653 = vmatprep.subr.bf16.mxu0 0
    %654 = vmatpush1.bf16.msra.mxu0 %v438
    %655 = vmatprep.subr.bf16.mxu0 0
    %656 = vmatpush1.bf16.msra.mxu0 %v441
    %657 = vmatprep.subr.bf16.mxu0 0
    %658 = vmatpush1.bf16.msra.mxu0 %v444
    %659 = vmatprep.mubr.bf16.mxu0 %v152
    %660 = vmatmul.mubr.bf16.gmra.mrb[0].mxu0 %v151
    %v661 = vpop.f32.mrb[0].mxu0
    %v662 = vadd.f32 0.0, %v661
    %v663 = vpop.f32.mrb[0].mxu0
    %v664 = vpop.f32.mrb[0].mxu0
    %v665 = vadd.f32 0.0, %v664
    %v666 = vpop.f32.mrb[0].mxu0
    %667 = vdwg.mxu0
    %668 = vmatprep.subr.bf16.mxu0 0
    %669 = vmatpush1.bf16.msra.mxu0 %v447
    %670 = vmatprep.subr.bf16.mxu0 0
    %671 = vmatpush1.bf16.msra.mxu0 %v450
    %672 = vmatprep.subr.bf16.mxu0 0
    %673 = vmatpush1.bf16.msra.mxu0 %v453
    %674 = vmatprep.subr.bf16.mxu0 0
    %675 = vmatpush1.bf16.msra.mxu0 %v456
    %676 = vmatprep.subr.bf16.mxu0 0
    %677 = vmatpush1.bf16.msra.mxu0 %v459
    %678 = vmatprep.subr.bf16.mxu0 0
    %679 = vmatpush1.bf16.msra.mxu0 %v462
    %680 = vmatprep.subr.bf16.mxu0 0
    %681 = vmatpush1.bf16.msra.mxu0 %v465
    %682 = vmatprep.subr.bf16.mxu0 0
    %683 = vmatpush1.bf16.msra.mxu0 %v468
    %684 = vmatprep.subr.bf16.mxu0 0
    %685 = vmatpush1.bf16.msra.mxu0 0
    %686 = vmatprep.subr.bf16.mxu0 0
    %687 = vmatpush1.bf16.msra.mxu0 0
    %688 = vmatprep.subr.bf16.mxu0 0
    %689 = vmatpush1.bf16.msra.mxu0 0
    %690 = vmatprep.subr.bf16.mxu0 0
    %691 = vmatpush1.bf16.msra.mxu0 0
    %692 = vmatprep.subr.bf16.mxu0 0
    %693 = vmatpush1.bf16.msra.mxu0 0
    %694 = vmatprep.subr.bf16.mxu0 0
    %695 = vmatpush1.bf16.msra.mxu0 0
    %696 = vmatprep.subr.bf16.mxu0 0
    %697 = vmatpush1.bf16.msra.mxu0 0
    %698 = vmatprep.subr.bf16.mxu0 0
    %699 = vmatpush1.bf16.msra.mxu0 0
    %700 = vmatprep.mubr.bf16.mxu0 0
    %701 = vmatmul.mubr.bf16.gmra.mrb[0].mxu0 %v153
    %v702 = vpop.f32.mrb[0].mxu0
    %v703 = vadd.f32 %v662, %v702
    %v704 = vpop.f32.mrb[0].mxu0
    %v705 = vpop.f32.mrb[0].mxu0
    %v706 = vadd.f32 %v665, %v705
    %v707 = vpop.f32.mrb[0].mxu0
    %708 = vdwg.mxu0
    %v709 = vpack.c.bf16 %v623, %v619
    %v711 = vunpack.c.l.b16 %v709
    %v712 = vunpack.c.h.b16 %v709
    %v713 = vpack.c.b16 %v711, %v711
    %v714 = vpack.c.b16 %v712, %v712
    %v717 = vpack.c.bf16 %v625, %v621
    %v719 = vunpack.c.l.b16 %v717
    %v720 = vunpack.c.h.b16 %v717
    %v721 = vpack.c.b16 %v719, %v719
    %v722 = vpack.c.b16 %v720, %v720
    %v725 = vpack.c.bf16 %v706, %v703
    %v727 = vunpack.c.l.b16 %v725
    %v728 = vunpack.c.h.b16 %v725
    %v729 = vpack.c.b16 %v727, %v727
    %v730 = vpack.c.b16 %v728, %v728
    %731 = vmatprep.subr.bf16.mxu0 0
    %732 = vmatpush1.bf16.xpose.msra.mxu0 %v713
    %733 = vmatprep.subr.bf16.mxu0 0
    %734 = vmatpush1.bf16.xpose.msra.mxu0 0
    %735 = vmatprep.subr.bf16.mxu0 0
    %736 = vmatpush1.bf16.xpose.msra.mxu0 0
    %737 = vmatprep.subr.bf16.mxu0 0
    %738 = vmatpush1.bf16.xpose.msra.mxu0 0
    %739 = vmatprep.subr.bf16.mxu0 0
    %740 = vmatpush1.bf16.xpose.msra.mxu0 0
    %741 = vmatprep.subr.bf16.mxu0 0
    %742 = vmatpush1.bf16.xpose.msra.mxu0 0
    %743 = vmatprep.subr.bf16.mxu0 0
    %744 = vmatpush1.bf16.xpose.msra.mxu0 0
    %745 = vmatprep.subr.bf16.mxu0 0
    %746 = vmatpush1.bf16.xpose.msra.mxu0 0
    %747 = vmatprep.subr.bf16.mxu0 0
    %748 = vmatpush1.bf16.xpose.msra.mxu0 0
    %749 = vmatprep.subr.bf16.mxu0 0
    %750 = vmatpush1.bf16.xpose.msra.mxu0 0
    %751 = vmatprep.subr.bf16.mxu0 0
    %752 = vmatpush1.bf16.xpose.msra.mxu0 0
    %753 = vmatprep.subr.bf16.mxu0 0
    %754 = vmatpush1.bf16.xpose.msra.mxu0 0
    %755 = vmatprep.subr.bf16.mxu0 0
    %756 = vmatpush1.bf16.xpose.msra.mxu0 0
    %757 = vmatprep.subr.bf16.mxu0 0
    %758 = vmatpush1.bf16.xpose.msra.mxu0 0
    %759 = vmatprep.subr.bf16.mxu0 0
    %760 = vmatpush1.bf16.xpose.msra.mxu0 0
    %761 = vmatprep.subr.bf16.mxu0 0
    %762 = vmatpush1.bf16.xpose.msra.mxu0 0
    %763 = vmatprep.mubr.bf16.mxu0 0
    %764 = vmatmul.mubr.bf16.gmra.mrb[0].mxu0 %v721
    %v765 = vpop.f32.mrb[0].mxu0
    %v766 = vadd.f32 0.0, %v765
    %v767 = vpop.f32.mrb[0].mxu0
    %v768 = vpop.f32.mrb[0].mxu0
    %v769 = vpop.f32.mrb[0].mxu0
    %770 = vdwg.mxu0
    %771 = vmatprep.subr.bf16.mxu0 0
    %772 = vmatpush1.bf16.xpose.msra.mxu0 %v714
    %773 = vmatprep.subr.bf16.mxu0 0
    %774 = vmatpush1.bf16.xpose.msra.mxu0 0
    %775 = vmatprep.subr.bf16.mxu0 0
    %776 = vmatpush1.bf16.xpose.msra.mxu0 0
    %777 = vmatprep.subr.bf16.mxu0 0
    %778 = vmatpush1.bf16.xpose.msra.mxu0 0
    %779 = vmatprep.subr.bf16.mxu0 0
    %780 = vmatpush1.bf16.xpose.msra.mxu0 0
    %781 = vmatprep.subr.bf16.mxu0 0
    %782 = vmatpush1.bf16.xpose.msra.mxu0 0
    %783 = vmatprep.subr.bf16.mxu0 0
    %784 = vmatpush1.bf16.xpose.msra.mxu0 0
    %785 = vmatprep.subr.bf16.mxu0 0
    %786 = vmatpush1.bf16.xpose.msra.mxu0 0
    %787 = vmatprep.subr.bf16.mxu0 0
    %788 = vmatpush1.bf16.xpose.msra.mxu0 0
    %789 = vmatprep.subr.bf16.mxu0 0
    %790 = vmatpush1.bf16.xpose.msra.mxu0 0
    %791 = vmatprep.subr.bf16.mxu0 0
    %792 = vmatpush1.bf16.xpose.msra.mxu0 0
    %793 = vmatprep.subr.bf16.mxu0 0
    %794 = vmatpush1.bf16.xpose.msra.mxu0 0
    %795 = vmatprep.subr.bf16.mxu0 0
    %796 = vmatpush1.bf16.xpose.msra.mxu0 0
    %797 = vmatprep.subr.bf16.mxu0 0
    %798 = vmatpush1.bf16.xpose.msra.mxu0 0
    %799 = vmatprep.subr.bf16.mxu0 0
    %800 = vmatpush1.bf16.xpose.msra.mxu0 0
    %801 = vmatprep.subr.bf16.mxu0 0
    %802 = vmatpush1.bf16.xpose.msra.mxu0 0
    %803 = vmatprep.mubr.bf16.mxu0 0
    %804 = vmatmul.mubr.bf16.gmra.mrb[0].mxu0 %v722
    %v805 = vpop.f32.mrb[0].mxu0
    %v806 = vadd.f32 0.0, %v805
    %v807 = vpop.f32.mrb[0].mxu0
    %v808 = vpop.f32.mrb[0].mxu0
    %v809 = vpop.f32.mrb[0].mxu0
    %810 = vdwg.mxu0
    %v811 = vlaneseq
    %v812 = vshrl.u32 %v811, 7
    %v813 = vlaneseq
    %v814 = vand.u32 %v813, 127
    %vm815 = vcmp.le.s32.totalorder %v814, %v812
    %v816 = vsel %vm815, 1, 0
    %vm817 = vcmp.eq.s32.totalorder %v816, 1
    %v818 = vsel %vm817, %v766, -1e+30
    %v819 = vsel %vm817, %v806, -1e+30
    %vm820 = vcmask 64512
    %v821 = vsel %vm820, %v818, -inf
    %822 = vmax.xlane.f32.xlu0 %v821
    %v823 = vpop.xlane.xlu0 %822
    %v824 = vsel %vm820, %v819, -inf
    %825 = vmax.xlane.f32.xlu0 %v824
    %v826 = vpop.xlane.xlu0 %825
    %v827 = vsub.f32 %v818, %v823
    %v828 = vsub.f32 %v819, %v826
    %v829 = vmul.f32 %v827, 1.442695
    %v830 = vpow.pop %v829
    %v831 = vmul.f32 %v828, 1.442695
    %v832 = vpow.pop %v831
    %v833 = vsel %vm820, %v830, 0.0
    %834 = vadd.xlane.f32.xlu0 %v833
    %v835 = vpop.xlane.xlu0 %834
    %v836 = vsel %vm820, %v832, 0.0
    %837 = vadd.xlane.f32.xlu0 %v836
    %v838 = vpop.xlane.xlu0 %837
    %v839 = vrcp.pop %v835
    %v840 = vrcp.pop %v838
    %v841 = vmul.f32 %v830, %v839
    %v842 = vmul.f32 %v832, %v840
    %v843 = vpack.c.bf16 %v841, %v841
    %v844 = vpack.c.bf16 %v842, %v842
    %v846 = vsel %vm820, %v843, 0
    %vm848 = vcmask 1043456
    %v850 = vsel %vm848, %v729, 0
    %852 = vmatprep.subr.bf16.mxu0 0
    %853 = vmatpush1.bf16.msra.mxu0 %v850
    %854 = vmatprep.subr.bf16.mxu0 0
    %855 = vmatpush1.bf16.msra.mxu0 0
    %856 = vmatprep.subr.bf16.mxu0 0
    %857 = vmatpush1.bf16.msra.mxu0 0
    %858 = vmatprep.subr.bf16.mxu0 0
    %859 = vmatpush1.bf16.msra.mxu0 0
    %860 = vmatprep.subr.bf16.mxu0 0
    %861 = vmatpush1.bf16.msra.mxu0 0
    %862 = vmatprep.subr.bf16.mxu0 0
    %863 = vmatpush1.bf16.msra.mxu0 0
    %864 = vmatprep.subr.bf16.mxu0 0
    %865 = vmatpush1.bf16.msra.mxu0 0
    %866 = vmatprep.subr.bf16.mxu0 0
    %867 = vmatpush1.bf16.msra.mxu0 0
    %868 = vmatprep.subr.bf16.mxu0 0
    %869 = vmatpush1.bf16.msra.mxu0 0
    %870 = vmatprep.subr.bf16.mxu0 0
    %871 = vmatpush1.bf16.msra.mxu0 0
    %872 = vmatprep.subr.bf16.mxu0 0
    %873 = vmatpush1.bf16.msra.mxu0 0
    %874 = vmatprep.subr.bf16.mxu0 0
    %875 = vmatpush1.bf16.msra.mxu0 0
    %876 = vmatprep.subr.bf16.mxu0 0
    %877 = vmatpush1.bf16.msra.mxu0 0
    %878 = vmatprep.subr.bf16.mxu0 0
    %879 = vmatpush1.bf16.msra.mxu0 0
    %880 = vmatprep.subr.bf16.mxu0 0
    %881 = vmatpush1.bf16.msra.mxu0 0
    %882 = vmatprep.subr.bf16.mxu0 0
    %883 = vmatpush1.bf16.msra.mxu0 0
    %884 = vmatprep.mubr.bf16.mxu0 0
    %885 = vmatmul.mubr.bf16.gmra.mrb[0].mxu0 %v846
    %v886 = vpop.f32.mrb[0].mxu0
    %v887 = vadd.f32 0.0, %v886
    %v888 = vpop.f32.mrb[0].mxu0
    %v889 = vpop.f32.mrb[0].mxu0
    %v890 = vpop.f32.mrb[0].mxu0
    %891 = vdwg.mxu0
    %v893 = vsel %vm820, %v844, 0
    %v896 = vsel %vm848, %v730, 0
    %898 = vmatprep.subr.bf16.mxu0 0
    %899 = vmatpush1.bf16.msra.mxu0 %v896
    %900 = vmatprep.subr.bf16.mxu0 0
    %901 = vmatpush1.bf16.msra.mxu0 0
    %902 = vmatprep.subr.bf16.mxu0 0
    %903 = vmatpush1.bf16.msra.mxu0 0
    %904 = vmatprep.subr.bf16.mxu0 0
    %905 = vmatpush1.bf16.msra.mxu0 0
    %906 = vmatprep.subr.bf16.mxu0 0
    %907 = vmatpush1.bf16.msra.mxu0 0
    %908 = vmatprep.subr.bf16.mxu0 0
    %909 = vmatpush1.bf16.msra.mxu0 0
    %910 = vmatprep.subr.bf16.mxu0 0
    %911 = vmatpush1.bf16.msra.mxu0 0
    %912 = vmatprep.subr.bf16.mxu0 0
    %913 = vmatpush1.bf16.msra.mxu0 0
    %914 = vmatprep.subr.bf16.mxu0 0
    %915 = vmatpush1.bf16.msra.mxu0 0
    %916 = vmatprep.subr.bf16.mxu0 0
    %917 = vmatpush1.bf16.msra.mxu0 0
    %918 = vmatprep.subr.bf16.mxu0 0
    %919 = vmatpush1.bf16.msra.mxu0 0
    %920 = vmatprep.subr.bf16.mxu0 0
    %921 = vmatpush1.bf16.msra.mxu0 0
    %922 = vmatprep.subr.bf16.mxu0 0
    %923 = vmatpush1.bf16.msra.mxu0 0
    %924 = vmatprep.subr.bf16.mxu0 0
    %925 = vmatpush1.bf16.msra.mxu0 0
    %926 = vmatprep.subr.bf16.mxu0 0
    %927 = vmatpush1.bf16.msra.mxu0 0
    %928 = vmatprep.subr.bf16.mxu0 0
    %929 = vmatpush1.bf16.msra.mxu0 0
    %930 = vmatprep.mubr.bf16.mxu0 0
    %931 = vmatmul.mubr.bf16.gmra.mrb[0].mxu0 %v893
    %v932 = vpop.f32.mrb[0].mxu0
    %v933 = vadd.f32 0.0, %v932
    %v934 = vpop.f32.mrb[0].mxu0
    %v935 = vpop.f32.mrb[0].mxu0
    %v936 = vpop.f32.mrb[0].mxu0
    %937 = vdwg.mxu0
    %v938 = vpack.c.bf16 %v887, %v887
    %v939 = vpack.c.bf16 %v933, %v933
    %940 = vst [vmem:[#allocation7] sm:$0xf] %v938
    %941 = vst [vmem:[#allocation7 + $0x4] sm:$0xf] %v939
    // Predicated region
    $region18: #{tpu_custom_call.1} parent=1 // pred_check
      _
    $region19: #{tpu_custom_call.1} parent=1 // pred_check_branch
      %943 = sbr.rel (0) target = $region21
    $region20: #{tpu_custom_call.1} parent=1 // pred_region
      %s945 = ssub.s32 128, 128
      %946 = vsyncadd [#allocation4], %s945
      %s947 = sshll.u32 [#allocation7], 4
      %s948 = int_to_ptr.vmem [resolvable:$true] %s947
      %953 = dma.vmem_to_hbm [thread:$0]  %s948, 128, %s2, [#allocation4], 64, 64, 4
    $region21: #{tpu_custom_call.1} parent=1 // pred_fallthru
      _
    // Predicated region
    $region22: #{tpu_custom_call.1} parent=1 // pred_check
      _
    $region23: #{tpu_custom_call.1} parent=1 // pred_check_branch
      %955 = sbr.rel (0) target = $region25
    $region24: #{tpu_custom_call.1} parent=1 // pred_region
      %956 = dma.done [#allocation4], 128
    $region25: #{tpu_custom_call.1} parent=1 // pred_fallthru
      _
    %957 = vsyncpa [#allocation3], 1
    %958 = vsyncpa [#allocation6], 1
    %959 = vsyncpa [#allocation4], 1

</llo_original>
